<compile_context>
chip_gen: v7x
topology: tpu7x:2x2x1
jax: 0.10.0
libtpu: 0.0.40
codegen_flags: <defaults>
</compile_context>

<pallas_src>
import functools

import jax
import jax.numpy as jnp
from jax.experimental import pallas as pl
from jax.experimental.pallas import tpu as pltpu


# ----------------------------------------------------------------------------
# VMEM accounting (padded tile bytes) + nb chooser.
# ----------------------------------------------------------------------------
def _round_up(x, m):
    return ((x + m - 1) // m) * m


def _sublane_tile(dtype):
    # 8 sublanes for 4-byte dtypes, 16 for 2-byte, 32 for 1-byte.
    return max(8, 32 // jnp.dtype(dtype).itemsize)


def _padded_bytes(shape, dtype):
    """VMEM bytes of a tile once minor dims are padded to (sublane_tile, 128)."""
    s = list(shape)
    if len(s) >= 1:
        s[-1] = _round_up(int(s[-1]), 128)
    if len(s) >= 2:
        s[-2] = _round_up(int(s[-2]), _sublane_tile(dtype))
    n = 1
    for d in s:
        n *= int(d)
    return n * jnp.dtype(dtype).itemsize


def _default_vmem_budget_bytes():
    # Stay under the DEFAULT scoped-VMEM limit on every generation so no
    # vmem_limit_bytes override is required: 16 MiB (v5e) / 32 MiB (v6e, v7x).
    try:
        kind = jax.devices()[0].device_kind.lower()
    except Exception:  # pragma: no cover - defensive
        kind = ""
    if "v5 lite" in kind or "v5e" in kind:
        return 12 * 2**20
    return 24 * 2**20


def _choose_nb(N, W, vmem_bytes_fn, *, budget_bytes, max_rows=256):
    """Largest nb (samples per grid step) such that:
         * nb divides N (no tail masking),
         * >= min(N, 4) grid steps remain (>= 2 pipelined steps per TensorCore
           on v7x; keeps the double buffer primed on v5e/v6e),
         * nb*W <= max_rows (matmul M dim / scratch rows / unrolled code size),
         * the double-buffered, PADDED working set fits the VMEM budget.
    """
    min_steps = min(N, 4)
    best = 1
    for nb in range(1, N + 1):
        if N % nb:
            continue
        if N // nb < min_steps:
            continue
        if nb * W > max_rows:
            continue
        if vmem_bytes_fn(nb) > budget_bytes:
            continue
        best = nb
    return best


# ----------------------------------------------------------------------------
# Kernel 1: AdaptiveAvgPool2d((None, 1)) path == mean over H, fused NCHW->NWC.
# The H-reduction + transpose run as an MXU matmul against a 0/1 selection
# matrix; the only XLU work is one lane-dense (C,HW)->(HW,C) transpose/sample.
# ----------------------------------------------------------------------------
def _mean_height_kernel(x_ref, p_ref, o_ref, *, nb, height):
    # x_ref: (nb, C, H*W)   p_ref: (W, H*W) with p[w, h*W + w] = 1   o_ref: (nb, W, C)
    inv_h = 1.0 / float(height)
    p = p_ref[...]
    for n in range(nb):                       # nb capped small by _choose_nb
        t = jnp.transpose(x_ref[n], (1, 0))   # (H*W, C): lane dim = C (lane-dense)
        acc = jnp.dot(p, t, preferred_element_type=jnp.float32)   # (W, C) f32
        o_ref[n] = (acc * inv_h).astype(o_ref.dtype)


def mean_height_pool(visual_feature, vmem_budget_bytes=None):
    """visual_feature: (N, C, H, W) -> (N, W, C)  (AdaptiveAvgPool path)."""
    N, C, H, W = visual_feature.shape
    HW = H * W
    dt = visual_feature.dtype
    budget = vmem_budget_bytes or _default_vmem_budget_bytes()

    x = visual_feature.reshape(N, C, HW)      # free reshape of contiguous NCHW
    # 0/1 height-selection matrix (exact in any dtype); result scaled by 1/H in f32.
    cols = jax.lax.broadcasted_iota(jnp.int32, (W, HW), 1)
    rows = jax.lax.broadcasted_iota(jnp.int32, (W, HW), 0)
    pool = (cols % W == rows).astype(dt)

    def vmem_bytes(nb):
        return (2 * _padded_bytes((nb, C, HW), dt)      # double-buffered input
                + 2 * _padded_bytes((nb, W, C), dt)     # double-buffered output
                + 2 * _padded_bytes((W, HW), dt))       # resident selection matrix

    nb = _choose_nb(N, W, vmem_bytes, budget_bytes=budget, max_rows=512)

    return pl.pallas_call(
        functools.partial(_mean_height_kernel, nb=nb, height=H),
        out_shape=jax.ShapeDtypeStruct((N, W, C), dt),
        grid=(N // nb,),
        in_specs=[pl.BlockSpec((nb, C, HW), lambda i: (i, 0, 0)),
                  pl.BlockSpec((W, HW), lambda i: (0, 0))],
        out_specs=pl.BlockSpec((nb, W, C), lambda i: (i, 0, 0)),
        compiler_params=pltpu.CompilerParams(
            dimension_semantics=("parallel",)),
    )(x, pool)


# ----------------------------------------------------------------------------
# Kernel 2: proj_feat path == Linear(C*3 -> C) on permute(0,3,1,2).flatten(-2),
# fused into ONE matmul with K = H*C per grid step.
# ----------------------------------------------------------------------------
def prepare_proj_weight(weight, C, H=3, dtype=None):
    """Rearrange the PyTorch Linear(C*H, C) weight (Cout, C*H) [col = c*H + h,
    from permute(0,3,1,2).flatten(-2) of NCHW] into a fused (H*C, Cout) matrix
    with row index h*C + c.  Call ONCE outside the hot path.  Pass
    dtype=jnp.bfloat16 for MXU-native mixed precision (f32 accumulation kept)."""
    Cout = weight.shape[0]
    assert weight.shape == (Cout, C * H)
    w = jnp.transpose(weight.reshape(Cout, C, H), (2, 1, 0)).reshape(H * C, Cout)
    return w.astype(dtype) if dtype is not None else w


def _proj_kernel(x_ref, w_ref, b_ref, o_ref, xt_ref, *, nb, height):
    # x_ref : (nb, C, H*W)    w_ref: (H*C, Cout)    b_ref: (1, Cout)
    # o_ref : (nb, W, Cout)   xt_ref: (nb*W, H*C) VMEM scratch (compute dtype)
    C = x_ref.shape[1]
    HW = x_ref.shape[2]
    W = HW // height
    # Stage the permute(0,3,1,2).flatten(-2) operand:
    #   xt[n*W + w, h*C + c] = x[n, c, h*W + w]
    # One lane-dense (C,HW)->(HW,C) transpose per sample, then H slice copies at
    # lane offsets h*C (aligned when C % 128 == 0).  No per-(n,h) tiny transposes.
    for n in range(nb):
        t = jnp.transpose(x_ref[n], (1, 0)).astype(xt_ref.dtype)   # (H*W, C)
        for h in range(height):
            xt_ref[pl.ds(n * W, W), pl.ds(h * C, C)] = t[h * W:(h + 1) * W, :]
    # Single fused matmul: (nb*W, H*C) @ (H*C, Cout), f32 accumulation; bias in f32.
    y = jnp.dot(xt_ref[...], w_ref[...], preferred_element_type=jnp.float32)
    y = y + b_ref[...].astype(jnp.float32)
    o_ref[...] = y.reshape(nb, W, -1).astype(o_ref.dtype)          # lane-dense store


def proj_feat(visual_feature, weight_fused, bias, vmem_budget_bytes=None):
    """visual_feature: (N, C, H, W); weight_fused: (H*C, Cout) from
    prepare_proj_weight; bias: (Cout,)  ->  (N, W, Cout)."""
    N, C, H, W = visual_feature.shape
    HW = H * W
    assert weight_fused.shape[0] == H * C, "weight must be prepared for this (C, H)"
    Cout = weight_fused.shape[1]
    dt = visual_feature.dtype
    cdt = weight_fused.dtype                 # compute dtype (bf16 if pre-cast)
    budget = vmem_budget_bytes or _default_vmem_budget_bytes()

    x = visual_feature.reshape(N, C, HW)     # free reshape of contiguous NCHW
    b2 = bias.reshape(1, Cout)

    def vmem_bytes(nb):
        return (2 * _padded_bytes((nb, C, HW), dt)       # double-buffered input
                + 2 * _padded_bytes((nb, W, Cout), dt)   # double-buffered output
                + 2 * _padded_bytes((H * C, Cout), cdt)  # resident fused weight
                + 2 * _padded_bytes((1, Cout), bias.dtype)
                + _padded_bytes((nb * W, H * C), cdt))   # staging scratch

    nb = _choose_nb(N, W, vmem_bytes, budget_bytes=budget, max_rows=256)

    return pl.pallas_call(
        functools.partial(_proj_kernel, nb=nb, height=H),
        out_shape=jax.ShapeDtypeStruct((N, W, Cout), dt),
        grid=(N // nb,),
        in_specs=[
            pl.BlockSpec((nb, C, HW), lambda i: (i, 0, 0)),
            pl.BlockSpec((H * C, Cout), lambda i: (0, 0)),   # resident weight
            pl.BlockSpec((1, Cout), lambda i: (0, 0)),
        ],
        out_specs=pl.BlockSpec((nb, W, Cout), lambda i: (i, 0, 0)),
        scratch_shapes=[pltpu.VMEM((nb * W, H * C), cdt)],
        compiler_params=pltpu.CompilerParams(
            dimension_semantics=("parallel",)),
    )(x, weight_fused, b2)


# ----------------------------------------------------------------------------
# FeatExtractorBuilder forward (functional wrapper)
# ----------------------------------------------------------------------------
def feat_extractor_forward(inp, flow, mean_height, params=None):
    # FeatureExtraction: identity stand-in (see TODO at top of file).
    visual_feature = inp
    if flow["Seq"] in ("BiLSTM", "BiLSTM_3L"):
        if mean_height:
            visual_feature = mean_height_pool(visual_feature)
        else:
            visual_feature = proj_feat(visual_feature,
                                       params["proj_w_fused"], params["proj_b"])
    return visual_feature


# ----------------------------------------------------------------------------
# Pure-JAX references
# ----------------------------------------------------------------------------
def _ref_mean_height(vf):
    # permute(0,3,1,2) -> (N,W,C,H); AdaptiveAvgPool2d((None,1)) -> mean over H
    return jnp.mean(jnp.transpose(vf, (0, 3, 1, 2)), axis=-1)


def _ref_proj(vf, weight, bias):
    N, C, H, W = vf.shape
    x = jnp.transpose(vf, (0, 3, 1, 2)).reshape(N, W, C * H)
    return x @ weight.T + bias


if __name__ == "__main__":
    key = jax.random.PRNGKey(0)
    k1, k2, k3, k4 = jax.random.split(key, 4)

    flow = {"Feat": "VGG", "Seq": "BiLSTM"}

    # --- mean_height=True path: backbone-style features (N, C, H, W) ---
    N, C, H, W = 4, 32, 8, 16
    vf_pool = jax.random.normal(k1, (N, C, H, W), dtype=jnp.float32)
    out_pool = feat_extractor_forward(vf_pool, flow, mean_height=True)
    out_pool = jax.block_until_ready(out_pool)
    ref_pool = _ref_mean_height(vf_pool)
    assert out_pool.shape == (N, W, C)
    assert jnp.allclose(out_pool, ref_pool, atol=1e-4, rtol=1e-4)

    # --- mean_height=False path: Linear(C*3 -> C), requires H == 3 ---
    Hp = 3
    vf_proj = jax.random.normal(k2, (N, C, Hp, W), dtype=jnp.float32)
    # PyTorch Linear(C*3, C): weight (C, C*3), bias (C,). Deterministic init.
    proj_w = 0.05 * jax.random.normal(k3, (C, C * Hp), dtype=jnp.float32)
    proj_b = 0.05 * jax.random.normal(k4, (C,), dtype=jnp.float32)
    params = {"proj_w_fused": prepare_proj_weight(proj_w, C, Hp),  # prepared once
              "proj_b": proj_b}
    out_proj = feat_extractor_forward(vf_proj, flow, mean_height=False,
                                      params=params)
    out_proj = jax.block_until_ready(out_proj)
    ref_proj = _ref_proj(vf_proj, proj_w, proj_b)
    assert out_proj.shape == (N, W, C)
    assert jnp.allclose(out_proj, ref_proj, atol=1e-4, rtol=1e-4)

    print("KERNEL_OK")
</pallas_src>

<mosaic_0001>
module attributes {stable_mosaic.version = 11 : i64} {
  func.func @_mean_height_kernel(%arg0: i32, %arg1: memref<1x32x128xf32, #tpu.memory_space<vmem>>, %arg2: memref<16x128xf32, #tpu.memory_space<vmem>>, %arg3: memref<1x16x32xf32, #tpu.memory_space<vmem>>) attributes {dimension_semantics = [#tpu.dimension_semantics<parallel>], iteration_bounds = array<i64: 4>, scalar_prefetch = 0 : i64, scratch_operands = 0 : i64, tpu.core_type = #tpu.core_type<tc>, window_params = [{transform_indices = @transform_0, window_bounds = array<i64: 1, 32, 128>}, {pipeline_mode = #tpu.pipeline_mode<synchronous>, transform_indices = @transform_1, window_bounds = array<i64: 16, 128>}, {transform_indices = @transform_2, window_bounds = array<i64: 1, 16, 32>}]} {
    %c0 = arith.constant 0 : index
    %c0_0 = arith.constant 0 : index
    %0 = vector.load %arg2[%c0, %c0_0] : memref<16x128xf32, #tpu.memory_space<vmem>>, vector<16x128xf32>
    %c0_1 = arith.constant 0 : index
    %c0_2 = arith.constant 0 : index
    %c0_3 = arith.constant 0 : index
    %1 = vector.load %arg1[%c0_1, %c0_2, %c0_3] : memref<1x32x128xf32, #tpu.memory_space<vmem>>, vector<1x32x128xf32>
    %2 = vector.shape_cast %1 : vector<1x32x128xf32> to vector<32x128xf32>
    %3 = tpu.transpose %2, [1, 0] : vector<32x128xf32> -> vector<128x32xf32>
    %cst = arith.constant dense<0.000000e+00> : vector<16x32xf32>
    %4 = tpu.matmul %0, %3, %cst {dimension_numbers = #tpu.dot_dimension_numbers<[1], [0], [0], [1], [0, 0, 1, 1], [], []>} : vector<16x128xf32>, vector<128x32xf32>, vector<16x32xf32> -> vector<16x32xf32>
    %cst_4 = arith.constant 1.250000e-01 : f32
    %5 = vector.broadcast %cst_4 : f32 to vector<16x32xf32>
    %6 = arith.mulf %4, %5 : vector<16x32xf32>
    %c0_5 = arith.constant 0 : index
    %c0_6 = arith.constant 0 : index
    %c0_7 = arith.constant 0 : index
    %7 = vector.load %arg3[%c0_5, %c0_6, %c0_7] : memref<1x16x32xf32, #tpu.memory_space<vmem>>, vector<1x16x32xf32>
    %8 = vector.shape_cast %7 : vector<1x16x32xf32> to vector<16x32xf32>
    %9 = vector.shape_cast %6 : vector<16x32xf32> to vector<1x16x32xf32>
    tpu.vector_store %arg3[%c0_5, %c0_6, %c0_7], %9 {strides = array<i32>} : memref<1x16x32xf32, #tpu.memory_space<vmem>>, vector<1x16x32xf32>,
    return
  }
  func.func @transform_0(%arg0: i32) -> (i32, i32, i32) {
    %c0_i32 = arith.constant 0 : i32
    %c0_i32_0 = arith.constant 0 : i32
    %c0_i32_1 = arith.constant 0 : i32
    return %arg0, %c0_i32, %c0_i32_0 : i32, i32, i32
  }
  func.func @transform_1(%arg0: i32) -> (i32, i32) {
    %c0_i32 = arith.constant 0 : i32
    %c0_i32_0 = arith.constant 0 : i32
    %c0_i32_1 = arith.constant 0 : i32
    return %c0_i32, %c0_i32_0 : i32, i32
  }
  func.func @transform_2(%arg0: i32) -> (i32, i32, i32) {
    %c0_i32 = arith.constant 0 : i32
    %c0_i32_0 = arith.constant 0 : i32
    %c0_i32_1 = arith.constant 0 : i32
    return %arg0, %c0_i32, %c0_i32_0 : i32, i32, i32
  }
}

</mosaic_0001>

<llo_original>
// kernel: tpu_custom_call.1
$region0: #{tpu_custom_call.1}
  #allocation0 [shape = 'u32[]', space=smem, size = 0x4, offset = 0x4, fixed_abs, tag = 'smem constant byte address 0x4 - core index']
  #allocation1 [shape = 'u32[144,128]{1,0:T(1,128)}', space=vmem, size = 0x12000, scoped, tag = 'internal scratch']
  %s0 = inlined_call_operand.hbm [shape: f32[4,32,128], index: 0, kind: input, shape index: {}]
  %s1 = inlined_call_operand.hbm [shape: f32[16,128], index: 1, kind: input, shape index: {}]
  %s2 = inlined_call_operand.hbm [shape: f32[4,16,32], index: 2, kind: output, shape index: {}]
  %s3 = sld [smem:[#allocation0]]
  $region49: #{tpu_custom_call.1} parent=0
    _
  %s5 = ssub.s32 1, %s3
  %s6 = scalar_select 0, %s5, %s3
  $region1: #{tpu_custom_call.1} parent=0
    #allocation2 [shape = 'u8[32768]{0}', space=vmem, size = 0x8000, scoped, tag = 'input window, operand 0']
    #allocation3 [shape = 's32[2]{0}', space=sflag, size = 0x8, scoped, tag = 'scoped memory for tpu_custom_call.1']
    #allocation4 [shape = 's32[2]{0}', space=sflag, size = 0x8, scoped, tag = 'scoped memory for tpu_custom_call.1']
    #allocation5 [shape = 'u8[8192]{0}', space=vmem, size = 0x2000, scoped, tag = 'input window, operand 1, single buffered']
    #allocation6 [shape = 's32[1]{0}', space=sflag, size = 0x4, scoped, tag = 'scoped memory for tpu_custom_call.1']
    #allocation7 [shape = 'u8[16384]{0}', space=vmem, size = 0x4000, scoped, tag = 'output window, operand 0']
    %7 = vsyncpa [#allocation3], 0
    %s8 = scalar_lea.sflag [#allocation3], 1
    %9 = vsyncpa %s8, 0
    %10 = vsyncpa [#allocation6], 0
    %11 = vsyncpa [#allocation4], 0
    %s12 = scalar_lea.sflag [#allocation4], 1
    %13 = vsyncpa %s12, 0
    loop: start=0, step=1, limit=6
    $region2: #{tpu_custom_call.1} parent=1 // loop_pre_header
      _
    $region3: #{tpu_custom_call.1} parent=1 // loop_header
      %s15 = sphi 0, %s19
      %p16 = scmp.ge.s32.totalorder %s15, 6
      %s25 = sphi 0, %s27
      %s28 = sphi 0, %s25
      %s29 = sphi 0, %s28
      %s45 = sphi 0, %s29
      %s49 = sphi 0, %s49
      %s51 = sphi 0, %s49
      %s52 = sphi 0, %s51
      %s66 = sphi 0, %s52
      %s72 = sphi 0, %s74
      %s75 = sphi 0, %s72
      %s76 = sphi 0, %s75
      %s92 = sphi 0, %s76
    $region4: #{tpu_custom_call.1} parent=1 // loop_header_branch
      %18 = sbr.rel (%p16) target = $region8
    $region5: #{tpu_custom_call.1} parent=1 // loop_body
      %s20 = ssub.s32 %s15, 1
      %s21 = ssub.s32 %s15, 2
      %s22 = sadd.s32 %s15, 1
      %s23 = ssub.s32 %s15, %s22
      %p24 = scmp.eq.s32.totalorder %s23, 0
      %s26 = sadd.s32 %s25, 1
      %s27 = scalar_select %p24, %s25, %s26
      %p30 = pneg %p24
      %p31 = scmp.eq.s32.totalorder %s15, 3
      %p32 = por %p30, %p31
      %p33 = scmp.ne.s32.totalorder %s25, %s28
      %p34 = scmp.eq.s32.totalorder %s15, 0
      %p35 = por %p33, %p34
      %p36 = scmp.ne.s32.totalorder %s25, %s28
      %p37 = scmp.eq.s32.totalorder %s20, 3
      %p38 = por %p36, %p37
      %p39 = scmp.ne.s32.totalorder %s28, %s29
      %p40 = scmp.eq.s32.totalorder %s20, 0
      %p41 = por %p39, %p40
      %p42 = scmp.ne.s32.totalorder %s28, %s29
      %p43 = scmp.eq.s32.totalorder %s21, 3
      %p44 = por %p42, %p43
      %p46 = scmp.ne.s32.totalorder %s29, %s45
      %p47 = scmp.eq.s32.totalorder %s21, 0
      %p48 = por %p46, %p47
      %s50 = sadd.s32 %s49, 1
      %p53 = scmp.eq.s32.totalorder %s15, 3
      %p54 = scmp.ne.s32.totalorder %s49, %s51
      %p55 = scmp.eq.s32.totalorder %s15, 0
      %p56 = por %p54, %p55
      %p57 = scmp.ne.s32.totalorder %s49, %s51
      %p58 = scmp.eq.s32.totalorder %s20, 3
      %p59 = por %p57, %p58
      %p60 = scmp.ne.s32.totalorder %s51, %s52
      %p61 = scmp.eq.s32.totalorder %s20, 0
      %p62 = por %p60, %p61
      %p63 = scmp.ne.s32.totalorder %s51, %s52
      %p64 = scmp.eq.s32.totalorder %s21, 3
      %p65 = por %p63, %p64
      %p67 = scmp.ne.s32.totalorder %s52, %s66
      %p68 = scmp.eq.s32.totalorder %s21, 0
      %p69 = por %p67, %p68
      %s70 = ssub.s32 %s15, %s22
      %p71 = scmp.eq.s32.totalorder %s70, 0
      %s73 = sadd.s32 %s72, 1
      %s74 = scalar_select %p71, %s72, %s73
      %p77 = pneg %p71
      %p78 = scmp.eq.s32.totalorder %s15, 3
      %p79 = por %p77, %p78
      %p80 = scmp.ne.s32.totalorder %s72, %s75
      %p81 = scmp.eq.s32.totalorder %s15, 0
      %p82 = por %p80, %p81
      %p83 = scmp.ne.s32.totalorder %s72, %s75
      %p84 = scmp.eq.s32.totalorder %s20, 3
      %p85 = por %p83, %p84
      %p86 = scmp.ne.s32.totalorder %s75, %s76
      %p87 = scmp.eq.s32.totalorder %s20, 0
      %p88 = por %p86, %p87
      %p89 = scmp.ne.s32.totalorder %s75, %s76
      %p90 = scmp.eq.s32.totalorder %s21, 3
      %p91 = por %p89, %p90
      %p93 = scmp.ne.s32.totalorder %s76, %s92
      %p94 = scmp.eq.s32.totalorder %s21, 0
      %p95 = por %p93, %p94
      %p96 = scmp.le.s32.totalorder 1, %s15
      %p97 = scmp.lt.s32.totalorder %s15, 5
      %p98 = pnand %p96, %p97
      %p99 = pneg %p98
      // Predicated region
      $region9: #{tpu_custom_call.1} parent=5 // pred_check
        _
      $region10: #{tpu_custom_call.1} parent=5 // pred_check_branch
        %101 = sbr.rel (%p98) target = $region12
      $region11: #{tpu_custom_call.1} parent=5 // pred_region
        %s102 = ssub.s32 %s15, 1
        // Predicated region
        $region13: #{tpu_custom_call.1} parent=11 // pred_check
          %p103 = pneg %p62
        $region14: #{tpu_custom_call.1} parent=11 // pred_check_branch
          %105 = sbr.rel (%p103) target = $region16
        $region15: #{tpu_custom_call.1} parent=11 // pred_region
          %s107 = ssub.s32 256, 256
          %108 = vsyncadd [#allocation6], %s107
          %s109 = sshll.u32 [#allocation5], 4
          %s110 = int_to_ptr.vmem [resolvable:$true] %s109
          %115 = dma.hbm_to_vmem [thread:$0]  %s1, 256, %s110, [#allocation6], 128, 128, 8
        $region16: #{tpu_custom_call.1} parent=11 // pred_fallthru
          _
      $region12: #{tpu_custom_call.1} parent=5 // pred_fallthru
        _
      %p116 = scmp.lt.s32.totalorder %s15, 4
      // Predicated region
      $region17: #{tpu_custom_call.1} parent=5 // pred_check
        %p117 = pneg %p116
      $region18: #{tpu_custom_call.1} parent=5 // pred_check_branch
        %119 = sbr.rel (%p117) target = $region20
      $region19: #{tpu_custom_call.1} parent=5 // pred_region
        // Predicated region
        $region21: #{tpu_custom_call.1} parent=19 // pred_check
          %p120 = pneg %p35
        $region22: #{tpu_custom_call.1} parent=19 // pred_check_branch
          %122 = sbr.rel (%p120) target = $region24
        $region23: #{tpu_custom_call.1} parent=19 // pred_region
          %s123 = sand.u32 %s25, 1
          %s124 = scalar_lea.sflag [#allocation3], %s123
          %s125 = sand.u32 %s25, 1
          %s126 = smul.addr %s125, 32
          %s127 = scalar_lea.vmem [#allocation2], %s126
          %s129 = ssub.s32 512, 512
          %130 = vsyncadd %s124, %s129
          %s131 = smul.addr %s15, 4
          %s132 = smul.addr %s131, 128
          %s133 = scalar_lea.hbm %s0, %s132
          %s134 = sshll.u32 %s127, 4
          %s135 = int_to_ptr.vmem [resolvable:$true] %s134
          %140 = dma.hbm_to_vmem [thread:$0]  %s133, 512, %s135, %s124, 128, 128, 8
        $region24: #{tpu_custom_call.1} parent=19 // pred_fallthru
          _
      $region20: #{tpu_custom_call.1} parent=5 // pred_fallthru
        _
      %p141 = scmp.le.s32.totalorder 1, %s15
      %p142 = scmp.lt.s32.totalorder %s15, 5
      %p143 = pnand %p141, %p142
      %p144 = pneg %p143
      // Predicated region
      $region25: #{tpu_custom_call.1} parent=5 // pred_check
        _
      $region26: #{tpu_custom_call.1} parent=5 // pred_check_branch
        %146 = sbr.rel (%p143) target = $region28
      $region27: #{tpu_custom_call.1} parent=5 // pred_region
        %s147 = ssub.s32 %s15, 1
        %s148 = sand.u32 %s28, 1
        %s149 = scalar_lea.sflag [#allocation3], %s148
        %s150 = sand.u32 %s28, 1
        %s151 = smul.addr %s150, 32
        %s152 = scalar_lea.vmem [#allocation2], %s151
        // Predicated region
        $region29: #{tpu_custom_call.1} parent=27 // pred_check
          %p153 = pneg %p41
        $region30: #{tpu_custom_call.1} parent=27 // pred_check_branch
          %155 = sbr.rel (%p153) target = $region32
        $region31: #{tpu_custom_call.1} parent=27 // pred_region
          %156 = dma.done %s149, 512
        $region32: #{tpu_custom_call.1} parent=27 // pred_fallthru
          _
        // Predicated region
        $region33: #{tpu_custom_call.1} parent=27 // pred_check
          %p157 = pneg %p62
        $region34: #{tpu_custom_call.1} parent=27 // pred_check_branch
          %159 = sbr.rel (%p157) target = $region36
        $region35: #{tpu_custom_call.1} parent=27 // pred_region
          %160 = dma.done [#allocation6], 256
        $region36: #{tpu_custom_call.1} parent=27 // pred_fallthru
          _
        %s161 = sand.u32 %s28, 1
        %s162 = scalar_lea.sflag [#allocation3], %s161
        %s163 = sand.u32 %s28, 1
        %s164 = smul.addr %s163, 32
        %s165 = scalar_lea.vmem [#allocation2], %s164
        %p166 = pneg %p41
        %p167 = pneg %p38
        %p168 = pneg %p62
        %p169 = pneg %p59
        %p170 = pneg %p88
        %p171 = pneg %p85
        %s172 = sand.u32 %s75, 1
        %s173 = scalar_lea.sflag [#allocation4], %s172
        %s174 = sand.u32 %s75, 1
        %s175 = smul.addr %s174, 16
        %s176 = scalar_lea.vmem [#allocation7], %s175
        %v177 = vld [vmem:[#allocation5] sm:$0xff]
        %v178 = vld [vmem:[#allocation5 + $0x8] sm:$0xff]
        %v179 = vld [vmem:[%s152] sm:$0xff]
        %v180 = vld [vmem:[%s152 + $0x8] sm:$0xff]
        %v181 = vld [vmem:[%s152 + $0x10] sm:$0xff]
        %v182 = vld [vmem:[%s152 + $0x18] sm:$0xff]
        %183 = vmatprep.subr.mxu0 0.0
        %184 = vmatpush1.xpose.msra.mxu0 %v179
        %185 = vmatprep.subr.mxu0 0.0
        %186 = vmatpush1.xpose.msra.mxu0 %v180
        %187 = vmatprep.subr.mxu0 0.0
        %188 = vmatpush1.xpose.msra.mxu0 %v181
        %189 = vmatprep.subr.mxu0 0.0
        %190 = vmatpush1.xpose.msra.mxu0 %v182
        %191 = vmatprep.subr.mxu0 0.0
        %192 = vmatpush1.xpose.msra.mxu0 0.0
        %193 = vmatprep.subr.mxu0 0.0
        %194 = vmatpush1.xpose.msra.mxu0 0.0
        %195 = vmatprep.subr.mxu0 0.0
        %196 = vmatpush1.xpose.msra.mxu0 0.0
        %197 = vmatprep.subr.mxu0 0.0
        %198 = vmatpush1.xpose.msra.mxu0 0.0
        %199 = vmatprep.subr.mxu0 0.0
        %200 = vmatpush1.xpose.msra.mxu0 0.0
        %201 = vmatprep.subr.mxu0 0.0
        %202 = vmatpush1.xpose.msra.mxu0 0.0
        %203 = vmatprep.subr.mxu0 0.0
        %204 = vmatpush1.xpose.msra.mxu0 0.0
        %205 = vmatprep.subr.mxu0 0.0
        %206 = vmatpush1.xpose.msra.mxu0 0.0
        %207 = vmatprep.subr.mxu0 0.0
        %208 = vmatpush1.xpose.msra.mxu0 0.0
        %209 = vmatprep.subr.mxu0 0.0
        %210 = vmatpush1.xpose.msra.mxu0 0.0
        %211 = vmatprep.subr.mxu0 0.0
        %212 = vmatpush1.xpose.msra.mxu0 0.0
        %213 = vmatprep.subr.mxu0 0.0
        %214 = vmatpush1.xpose.msra.mxu0 0.0
        %215 = vmatprep.subr.mxu0 0.0
        %216 = vmatpush1.xpose.msra.mxu0 0.0
        %217 = vmatprep.subr.mxu0 0.0
        %218 = vmatpush1.xpose.msra.mxu0 0.0
        %219 = vmatprep.subr.mxu0 0.0
        %220 = vmatpush1.xpose.msra.mxu0 0.0
        %221 = vmatprep.subr.mxu0 0.0
        %222 = vmatpush1.xpose.msra.mxu0 0.0
        %223 = vmatprep.subr.mxu0 0.0
        %224 = vmatpush1.xpose.msra.mxu0 0.0
        %225 = vmatprep.subr.mxu0 0.0
        %226 = vmatpush1.xpose.msra.mxu0 0.0
        %227 = vmatprep.subr.mxu0 0.0
        %228 = vmatpush1.xpose.msra.mxu0 0.0
        %229 = vmatprep.subr.mxu0 0.0
        %230 = vmatpush1.xpose.msra.mxu0 0.0
        %231 = vmatprep.subr.mxu0 0.0
        %232 = vmatpush1.xpose.msra.mxu0 0.0
        %233 = vmatprep.subr.mxu0 0.0
        %234 = vmatpush1.xpose.msra.mxu0 0.0
        %235 = vmatprep.subr.mxu0 0.0
        %236 = vmatpush1.xpose.msra.mxu0 0.0
        %237 = vmatprep.subr.mxu0 0.0
        %238 = vmatpush1.xpose.msra.mxu0 0.0
        %239 = vmatprep.subr.mxu0 0.0
        %240 = vmatpush1.xpose.msra.mxu0 0.0
        %241 = vmatprep.subr.mxu0 0.0
        %242 = vmatpush1.xpose.msra.mxu0 0.0
        %243 = vmatprep.subr.mxu0 0.0
        %244 = vmatpush1.xpose.msra.mxu0 0.0
        %245 = vmatprep.subr.mxu0 0.0
        %246 = vmatpush1.xpose.msra.mxu0 0.0
        %247 = vmatprep.mubr.f32.mxu0 0.0
        %248 = vmatmul.mubr.f32.gmra.mrb[0].mxu0 %v177
        %v249 = vpop.f32.mrb[0].mxu0
        %v250 = vadd.f32 0.0, %v249
        %v251 = vpop.f32.mrb[0].mxu0
        %252 = vmatprep.mubr.f32.mxu0 0.0
        %253 = vmatmul.mubr.f32.gmra.mrb[0].mxu0 %v178
        %v254 = vpop.f32.mrb[0].mxu0
        %v255 = vadd.f32 0.0, %v254
        %v256 = vpop.f32.mrb[0].mxu0
        %257 = vdwg.mxu0
        %v258 = vmul.f32 %v250, 0.125
        %v259 = vmul.f32 %v255, 0.125
        %vm260 = vcmask 261120
        %261 = vst.msk [vmem:[%s176] sm:$0xff] %vm260, %v258
        %262 = vst.msk [vmem:[%s176 + $0x8] sm:$0xff] %vm260, %v259
        %s263 = sand.u32 %s75, 1
        %s264 = scalar_lea.sflag [#allocation4], %s263
        %s265 = sand.u32 %s75, 1
        %s266 = smul.addr %s265, 16
        %s267 = scalar_lea.vmem [#allocation7], %s266
        // Predicated region
        $region37: #{tpu_custom_call.1} parent=27 // pred_check
          %p268 = pneg %p85
        $region38: #{tpu_custom_call.1} parent=27 // pred_check_branch
          %270 = sbr.rel (%p268) target = $region40
        $region39: #{tpu_custom_call.1} parent=27 // pred_region
          %s272 = ssub.s32 256, 256
          %273 = vsyncadd %s264, %s272
          %s274 = smul.addr %s20, 2
          %s275 = smul.addr %s274, 128
          %s276 = scalar_lea.hbm %s2, %s275
          %s277 = sshll.u32 %s267, 4
          %s278 = int_to_ptr.vmem [resolvable:$true] %s277
          %283 = dma.vmem_to_hbm [thread:$0]  %s278, 256, %s276, %s264, 128, 128, 8
        $region40: #{tpu_custom_call.1} parent=27 // pred_fallthru
          _
      $region28: #{tpu_custom_call.1} parent=5 // pred_fallthru
        _
      %p284 = scmp.le.s32.totalorder 2, %s15
      // Predicated region
      $region41: #{tpu_custom_call.1} parent=5 // pred_check
        %p285 = pneg %p284
      $region42: #{tpu_custom_call.1} parent=5 // pred_check_branch
        %287 = sbr.rel (%p285) target = $region44
      $region43: #{tpu_custom_call.1} parent=5 // pred_region
        %s288 = ssub.s32 %s15, 2
        // Predicated region
        $region45: #{tpu_custom_call.1} parent=43 // pred_check
          %p289 = pneg %p91
        $region46: #{tpu_custom_call.1} parent=43 // pred_check_branch
          %291 = sbr.rel (%p289) target = $region48
        $region47: #{tpu_custom_call.1} parent=43 // pred_region
          %s292 = sand.u32 %s76, 1
          %s293 = scalar_lea.sflag [#allocation4], %s292
          %s294 = sand.u32 %s76, 1
          %s295 = smul.addr %s294, 16
          %s296 = scalar_lea.vmem [#allocation7], %s295
          %297 = dma.done %s293, 256
        $region48: #{tpu_custom_call.1} parent=43 // pred_fallthru
          _
      $region44: #{tpu_custom_call.1} parent=5 // pred_fallthru
        _
    $region6: #{tpu_custom_call.1} parent=1 // loop_footer
      %s19 = sadd.s32 1, %s15
    $region7: #{tpu_custom_call.1} parent=1 // loop_footer_branch
      %14 = sbr.rel target = $region3
    $region8: #{tpu_custom_call.1} parent=1 // loop_exit
      _
    %298 = vsyncpa [#allocation3], 1
    %s299 = scalar_lea.sflag [#allocation3], 1
    %300 = vsyncpa %s299, 1
    %301 = vsyncpa [#allocation6], 1
    %302 = vsyncpa [#allocation4], 1
    %s303 = scalar_lea.sflag [#allocation4], 1
    %304 = vsyncpa %s303, 1

</llo_original>
